<compile_context>
chip_gen: v7x
topology: tpu7x:2x2x1
jax: 0.10.0
libtpu: 0.0.40
codegen_flags: <defaults>
</compile_context>

<pallas_src>
import jax
import jax.numpy as jnp
from jax.experimental import pallas as pl
from jax.experimental.pallas import tpu as pltpu


def _add_pe_batched_kernel(x_ref, p_ref, o_ref):
    # x_ref / o_ref: (B, tile_r, C); p_ref: (tile_r, C) broadcast over batch.
    o_ref[...] = x_ref[...] + p_ref[...]


def _add_pe_kernel(x_ref, p_ref, o_ref):
    # x_ref / o_ref: (tile_r, C) (batch dim squeezed); p_ref: (tile_r, C).
    o_ref[...] = x_ref[...] + p_ref[...]


def make_pe_table(max_len, num_hiddens, dtype=jnp.float32):
    """Plain-JAX replica of the PyTorch P buffer: shape (max_len, num_hiddens)."""
    pos = jnp.arange(max_len, dtype=jnp.float32)[:, None]
    div = jnp.power(
        10000.0, jnp.arange(0, num_hiddens, 2, dtype=jnp.float32) / num_hiddens
    )
    ang = pos / div  # (max_len, ceil(H/2))
    P = jnp.zeros((max_len, num_hiddens), jnp.float32)
    P = P.at[:, 0::2].set(jnp.sin(ang))
    P = P.at[:, 1::2].set(jnp.cos(ang[:, : num_hiddens // 2]))
    return P.astype(dtype)


_TARGET_BLOCK_BYTES = 4 * 1024 * 1024   # ~4 MiB per x block -> ~24 MiB pipelined
_VMEM_LIMIT = 32 * 1024 * 1024          # > v5e's 16 MiB default, < v7x's ~48 MiB cap


def _round_up(v, m):
    return ((v + m - 1) // m) * m


@jax.jit
def positional_encoding(x, p_table):
    """x: (B, S, H); p_table: (max_len, H).  Returns dropout_{p=0}(x + P[:S])."""
    B, S, H = x.shape
    itemsize = x.dtype.itemsize

    # Pre-cast P in the wrapper (NOTE: PyTorch adds in f32 before any downcast;
    # for f32 inputs this is identical).
    p = p_table[:S, :].astype(x.dtype)

    # Lane-dense layout.
    pad = 0
    if (S * H) % 128 == 0:
        C = 128
        R = (S * H) // 128
        x2 = x.reshape(B, R, C)
        p2 = p.reshape(R, C)
    else:
        C = _round_up(H, 128)
        pad = C - H
        R = S
        x2 = jnp.pad(x, ((0, 0), (0, 0), (0, pad)))
        p2 = jnp.pad(p, ((0, 0), (0, pad)))

    row_bytes = C * itemsize

    # Fold the batch dim into the block when a full-batch block of >= 8 rows
    # fits the per-block budget (fewer grid steps; identical HBM traffic).
    fold_batch = (B * row_bytes * 8) <= _TARGET_BLOCK_BYTES

    if fold_batch:
        max_tile = max(8, (_TARGET_BLOCK_BYTES // (B * row_bytes)) // 8 * 8)
        if R <= max_tile:
            tile_r = R
        else:
            n = pl.cdiv(R, max_tile)
            tile_r = min(max_tile, _round_up(pl.cdiv(R, n), 8))
        n_tiles = pl.cdiv(R, tile_r)
        # v7x: keep >= 2 parallel grid steps for non-trivial workloads so both
        # TensorCores get work (irrelevant for the tiny d2l shapes).
        if n_tiles == 1 and R >= 16 and B * R * row_bytes >= (256 << 10):
            tile_r = _round_up(pl.cdiv(R, 2), 8)
            n_tiles = pl.cdiv(R, tile_r)

        out2 = pl.pallas_call(
            _add_pe_batched_kernel,
            out_shape=jax.ShapeDtypeStruct((B, R, C), x.dtype),
            grid=(n_tiles,),
            in_specs=[
                pl.BlockSpec((B, tile_r, C), lambda r: (0, r, 0)),
                pl.BlockSpec((tile_r, C), lambda r: (r, 0)),
            ],
            out_specs=pl.BlockSpec((B, tile_r, C), lambda r: (0, r, 0)),
            compiler_params=pltpu.CompilerParams(
                dimension_semantics=("parallel",),
                vmem_limit_bytes=_VMEM_LIMIT,
            ),
        )(x2, p2)
    else:
        # Large-batch fallback: (row, batch) grid, batch innermost so the P
        # block index is unchanged across the batch loop (stays VMEM-resident).
        max_tile = max(8, (_TARGET_BLOCK_BYTES // row_bytes) // 8 * 8)
        if R <= max_tile:
            tile_r = R
        else:
            n = pl.cdiv(R, max_tile)
            tile_r = min(max_tile, _round_up(pl.cdiv(R, n), 8))

        out2 = pl.pallas_call(
            _add_pe_kernel,
            out_shape=jax.ShapeDtypeStruct((B, R, C), x.dtype),
            grid=(pl.cdiv(R, tile_r), B),
            in_specs=[
                pl.BlockSpec((None, tile_r, C), lambda r, b: (b, r, 0)),
                pl.BlockSpec((tile_r, C), lambda r, b: (r, 0)),
            ],
            out_specs=pl.BlockSpec((None, tile_r, C), lambda r, b: (b, r, 0)),
            compiler_params=pltpu.CompilerParams(
                dimension_semantics=("parallel", "parallel"),
                vmem_limit_bytes=_VMEM_LIMIT,
            ),
        )(x2, p2)

    if pad:
        return out2[:, :, :H]
    return out2.reshape(B, S, H)


if __name__ == "__main__":
    key = jax.random.PRNGKey(0)
    B, num_steps, encoding_dim = 2, 8, 32  # small shapes consistent with module
    x = jax.random.normal(key, (B, num_steps, encoding_dim), dtype=jnp.float32)

    p_table = make_pe_table(1000, encoding_dim)  # max_len=1000, built once
    out = jax.block_until_ready(positional_encoding(x, p_table))

    # Plain-JAX reference: x + P[:, :S, :] (dropout p=0 is identity).
    ref = x + p_table[None, :num_steps, :]
    assert out.shape == (B, num_steps, encoding_dim)
    assert jnp.allclose(out, ref, atol=1e-6, rtol=1e-6), "mismatch vs reference"

    print("KERNEL_OK")
</pallas_src>

<mosaic_0001>
module attributes {stable_mosaic.version = 11 : i64} {
  func.func @_add_pe_batched_kernel(%arg0: i32, %arg1: memref<2x2x128xf32, #tpu.memory_space<vmem>>, %arg2: memref<2x128xf32, #tpu.memory_space<vmem>>, %arg3: memref<2x2x128xf32, #tpu.memory_space<vmem>>) attributes {dimension_semantics = [#tpu.dimension_semantics<parallel>], iteration_bounds = array<i64: 1>, scalar_prefetch = 0 : i64, scratch_operands = 0 : i64, tpu.core_type = #tpu.core_type<tc>, window_params = [{transform_indices = @transform_0, window_bounds = array<i64: 2, 2, 128>}, {transform_indices = @transform_1, window_bounds = array<i64: 2, 128>}, {transform_indices = @transform_2, window_bounds = array<i64: 2, 2, 128>}]} {
    %c0 = arith.constant 0 : index
    %c0_0 = arith.constant 0 : index
    %c0_1 = arith.constant 0 : index
    %0 = vector.load %arg1[%c0, %c0_0, %c0_1] : memref<2x2x128xf32, #tpu.memory_space<vmem>>, vector<2x2x128xf32>
    %c0_2 = arith.constant 0 : index
    %c0_3 = arith.constant 0 : index
    %1 = vector.load %arg2[%c0_2, %c0_3] : memref<2x128xf32, #tpu.memory_space<vmem>>, vector<2x128xf32>
    %2 = vector.shape_cast %1 : vector<2x128xf32> to vector<1x2x128xf32>
    %3 = vector.broadcast %2 : vector<1x2x128xf32> to vector<2x2x128xf32>
    %4 = arith.addf %0, %3 : vector<2x2x128xf32>
    %c0_4 = arith.constant 0 : index
    %c0_5 = arith.constant 0 : index
    %c0_6 = arith.constant 0 : index
    %5 = vector.load %arg3[%c0_4, %c0_5, %c0_6] : memref<2x2x128xf32, #tpu.memory_space<vmem>>, vector<2x2x128xf32>
    tpu.vector_store %arg3[%c0_4, %c0_5, %c0_6], %4 {strides = array<i32>} : memref<2x2x128xf32, #tpu.memory_space<vmem>>, vector<2x2x128xf32>,
    return
  }
  func.func @transform_0(%arg0: i32) -> (i32, i32, i32) {
    %c0_i32 = arith.constant 0 : i32
    %c0_i32_0 = arith.constant 0 : i32
    %c0_i32_1 = arith.constant 0 : i32
    return %c0_i32, %arg0, %c0_i32_0 : i32, i32, i32
  }
  func.func @transform_1(%arg0: i32) -> (i32, i32) {
    %c0_i32 = arith.constant 0 : i32
    %c0_i32_0 = arith.constant 0 : i32
    return %arg0, %c0_i32 : i32, i32
  }
  func.func @transform_2(%arg0: i32) -> (i32, i32, i32) {
    %c0_i32 = arith.constant 0 : i32
    %c0_i32_0 = arith.constant 0 : i32
    %c0_i32_1 = arith.constant 0 : i32
    return %c0_i32, %arg0, %c0_i32_0 : i32, i32, i32
  }
}

</mosaic_0001>

<llo_original>
// kernel: positional_encoding.1
$region0: #{positional_encoding.1}
  #allocation0 [shape = 'u32[]', space=smem, size = 0x4, offset = 0x4, fixed_abs, tag = 'smem constant byte address 0x4 - core index']
  #allocation1 [shape = 'u32[144,128]{1,0:T(1,128)}', space=vmem, size = 0x12000, scoped, tag = 'internal scratch']
  %s0 = inlined_call_operand.vmem [shape: f32[2,2,128], index: 0, kind: input, shape index: {}]
  %s1 = inlined_call_operand.vmem [shape: f32[2,128], index: 1, kind: input, shape index: {}]
  %s2 = inlined_call_operand.vmem [shape: f32[2,2,128], index: 2, kind: output, shape index: {}]
  %s3 = sld [smem:[#allocation0]]
  $region18: #{positional_encoding.1} parent=0
    _
  %s5 = ssub.s32 1, %s3
  %s6 = scalar_select 0, %s5, %s3
  // Predicated region
  $region2: #{positional_encoding.1} parent=0 // pred_check
    _
  $region3: #{positional_encoding.1} parent=0 // pred_check_branch
    %8 = sbr.rel (0) target = $region5
  $region4: #{positional_encoding.1} parent=0 // pred_region
    _
  $region5: #{positional_encoding.1} parent=0 // pred_fallthru
    _
  // Predicated region
  $region6: #{positional_encoding.1} parent=0 // pred_check
    _
  $region7: #{positional_encoding.1} parent=0 // pred_check_branch
    %10 = sbr.rel (0) target = $region9
  $region8: #{positional_encoding.1} parent=0 // pred_region
    _
  $region9: #{positional_encoding.1} parent=0 // pred_fallthru
    _
  %v11 = vld [vmem:[%s0] sm:$0x3]
  %v12 = vld [vmem:[%s0 + $0x2] sm:$0x3]
  %v13 = vld [vmem:[%s1] sm:$0x3]
  %v14 = vadd.f32 %v11, %v13
  %v15 = vadd.f32 %v12, %v13
  %16 = vst [vmem:[%s2] sm:$0x3] %v14
  %17 = vst [vmem:[%s2 + $0x2] sm:$0x3] %v15
  // Predicated region
  $region10: #{positional_encoding.1} parent=0 // pred_check
    _
  $region11: #{positional_encoding.1} parent=0 // pred_check_branch
    %19 = sbr.rel (0) target = $region13
  $region12: #{positional_encoding.1} parent=0 // pred_region
    _
  $region13: #{positional_encoding.1} parent=0 // pred_fallthru
    _
  // Predicated region
  $region14: #{positional_encoding.1} parent=0 // pred_check
    _
  $region15: #{positional_encoding.1} parent=0 // pred_check_branch
    %21 = sbr.rel (0) target = $region17
  $region16: #{positional_encoding.1} parent=0 // pred_region
    _
  $region17: #{positional_encoding.1} parent=0 // pred_fallthru
    _

</llo_original>
